<compile_context>
chip_gen: v7x
topology: tpu7x:2x2x1
jax: 0.10.0
libtpu: 0.0.40
codegen_flags: <defaults>
</compile_context>

<pallas_src>
import math

import jax
import jax.numpy as jnp
from jax.experimental import pallas as pl
from jax.experimental.pallas import tpu as pltpu  # noqa: F401  (TPU backend context)

# --- model config (small, consistent with the module) -----------------------
BATCH = 2
SEQ = 8
EMBED = 32
NUM_HEADS = 4
HEAD_DIM = EMBED // NUM_HEADS
SCALE = math.sqrt(HEAD_DIM)
NEG_INF = -1e9


def mha_kernel(x_ref, wqkv_ref, bqkv_ref, woh_ref, bo_ref, bias_ref, o_ref):
    # Everything is fully VMEM-resident: single invocation, no grid.
    x = x_ref[...]                                   # (T, E), T = B*S, f32

    # Fused Q/K/V projection: one (T,E) x (E,3E) MXU matmul instead of three.
    # 1/sqrt(head_dim) is already folded into the Q columns of wqkv/bqkv.
    qkv = jnp.dot(x, wqkv_ref[...], preferred_element_type=jnp.float32)
    qkv = qkv + bqkv_ref[...]                        # (T, 3E)

    # Head-major views (H, T, Hd): static 8-lane slices + leading-axis stack.
    def split_heads(col0):
        return jnp.stack(
            [qkv[:, col0 + h * HEAD_DIM: col0 + (h + 1) * HEAD_DIM]
             for h in range(NUM_HEADS)],
            axis=0)

    qh = split_heads(0 * EMBED)                      # (H, T, Hd)
    kh = split_heads(1 * EMBED)                      # (H, T, Hd)
    vh = split_heads(2 * EMBED)                      # (H, T, Hd)

    # Scores for all heads at once (head-batched MXU matmul).
    s = jnp.einsum('hqd,hkd->hqk', qh, kh,
                   preferred_element_type=jnp.float32)          # (H, T, T)
    # Additive mask: tokens only attend within their own batch element.
    s = s + bias_ref[...]                                       # bcast over H

    # Numerically stable softmax over the key axis.
    m = jnp.max(s, axis=-1, keepdims=True)
    p = jnp.exp(s - m)
    denom = jnp.sum(p, axis=-1, keepdims=True)
    # Exact reciprocal keeps the 1e-4 tolerance; approx=True would use the EUP
    # slot at ~1e-3 relative accuracy if the caller can tolerate it.
    p = p * pl.reciprocal(denom)
    # TODO(synk): dropout on attn_probs is identity in eval mode (not applied).

    # Attention context per head, then the output projection applied per head
    # (ctx_h @ Wo[h]) and reduced over heads -- no lane concatenate needed.
    ctx = jnp.einsum('hqk,hkd->hqd', p, vh,
                     preferred_element_type=jnp.float32)        # (H, T, Hd)
    out_h = jnp.einsum('hqd,hde->hqe', ctx, woh_ref[...],
                       preferred_element_type=jnp.float32)      # (H, T, E)
    out = jnp.sum(out_h, axis=0) + bo_ref[...]                  # (T, E)

    o_ref[...] = out.astype(o_ref.dtype)


@jax.jit
def multi_head_attention(x, wq, bq, wk, bk, wv, bv, wo, bo):
    B, S, E = x.shape
    T = B * S

    # --- zero-cost wrapper-side prep (plain XLA, outside the kernel) --------
    inv_scale = 1.0 / SCALE
    wqkv = jnp.concatenate([wq * inv_scale, wk, wv], axis=1)     # (E, 3E)
    bqkv = jnp.concatenate([bq * inv_scale, bk, bv], axis=1)     # (1, 3E)
    woh = wo.reshape(NUM_HEADS, HEAD_DIM, E)                     # (H, Hd, E)
    x_flat = x.reshape(T, E)                                     # (T, E)

    # Additive batch-block mask (0 within a batch element, -1e9 across).
    batch_id = jnp.arange(T, dtype=jnp.int32) // S
    same = batch_id[:, None] == batch_id[None, :]
    bias = jnp.where(same, 0.0, NEG_INF).astype(jnp.float32)     # (T, T)

    out = pl.pallas_call(
        mha_kernel,
        out_shape=jax.ShapeDtypeStruct((T, E), x.dtype),
    )(x_flat, wqkv, bqkv, woh, bo, bias)
    return out.reshape(B, S, E)


def reference_mha(x, wq, bq, wk, bk, wv, bv, wo, bo):
    """Plain-JAX reference mirroring the PyTorch forward (eval mode)."""
    B, S, E = x.shape
    q = x @ wq + bq
    k = x @ wk + bk
    v = x @ wv + bv

    def split(t):  # (B,S,E) -> (B,H,S,Hd)
        return t.reshape(B, S, NUM_HEADS, HEAD_DIM).transpose(0, 2, 1, 3)

    qh, kh, vh = split(q), split(k), split(v)
    scores = jnp.einsum("bhqd,bhkd->bhqk", qh, kh) / SCALE
    probs = jax.nn.softmax(scores, axis=-1)
    ctx = jnp.einsum("bhqk,bhkd->bhqd", probs, vh)
    ctx = ctx.transpose(0, 2, 1, 3).reshape(B, S, E)
    return ctx @ wo + bo


if __name__ == "__main__":
    key = jax.random.PRNGKey(0)
    ks = jax.random.split(key, 9)

    x = jax.random.normal(ks[0], (BATCH, SEQ, EMBED), dtype=jnp.float32)

    scale = 1.0 / math.sqrt(EMBED)
    wq = jax.random.normal(ks[1], (EMBED, EMBED), jnp.float32) * scale
    wk = jax.random.normal(ks[2], (EMBED, EMBED), jnp.float32) * scale
    wv = jax.random.normal(ks[3], (EMBED, EMBED), jnp.float32) * scale
    wo = jax.random.normal(ks[4], (EMBED, EMBED), jnp.float32) * scale
    bq = jax.random.normal(ks[5], (1, EMBED), jnp.float32) * 0.01
    bk = jax.random.normal(ks[6], (1, EMBED), jnp.float32) * 0.01
    bv = jax.random.normal(ks[7], (1, EMBED), jnp.float32) * 0.01
    bo = jax.random.normal(ks[8], (1, EMBED), jnp.float32) * 0.01

    out = multi_head_attention(x, wq, bq, wk, bk, wv, bv, wo, bo)
    out = jax.block_until_ready(out)

    ref = reference_mha(x, wq, bq, wk, bk, wv, bv, wo, bo)
    assert out.shape == (BATCH, SEQ, EMBED)
    assert jnp.allclose(out, ref, atol=1e-4, rtol=1e-4), "mismatch vs reference"

    print("KERNEL_OK")
</pallas_src>

<mosaic_0001>
module attributes {stable_mosaic.version = 11 : i64} {
  func.func @mha_kernel(%arg0: memref<16x32xf32, #tpu.memory_space<vmem>>, %arg1: memref<32x96xf32, #tpu.memory_space<vmem>>, %arg2: memref<1x96xf32, #tpu.memory_space<vmem>>, %arg3: memref<4x8x32xf32, #tpu.memory_space<vmem>>, %arg4: memref<1x32xf32, #tpu.memory_space<vmem>>, %arg5: memref<16x16xf32, #tpu.memory_space<vmem>>, %arg6: memref<16x32xf32, #tpu.memory_space<vmem>>) attributes {dimension_semantics = [], scalar_prefetch = 0 : i64, scratch_operands = 0 : i64, tpu.core_type = #tpu.core_type<tc>} {
    %c0 = arith.constant 0 : index
    %c0_0 = arith.constant 0 : index
    %0 = vector.load %arg0[%c0, %c0_0] : memref<16x32xf32, #tpu.memory_space<vmem>>, vector<16x32xf32>
    %c0_1 = arith.constant 0 : index
    %c0_2 = arith.constant 0 : index
    %1 = vector.load %arg1[%c0_1, %c0_2] : memref<32x96xf32, #tpu.memory_space<vmem>>, vector<32x96xf32>
    %cst = arith.constant dense<0.000000e+00> : vector<16x96xf32>
    %2 = tpu.matmul %0, %1, %cst {dimension_numbers = #tpu.dot_dimension_numbers<[1], [0], [0], [1], [0, 0, 1, 1], [], []>} : vector<16x32xf32>, vector<32x96xf32>, vector<16x96xf32> -> vector<16x96xf32>
    %c0_3 = arith.constant 0 : index
    %c0_4 = arith.constant 0 : index
    %3 = vector.load %arg2[%c0_3, %c0_4] : memref<1x96xf32, #tpu.memory_space<vmem>>, vector<1x96xf32>
    %4 = vector.broadcast %3 : vector<1x96xf32> to vector<16x96xf32>
    %5 = arith.addf %2, %4 : vector<16x96xf32>
    %6 = vector.extract_strided_slice %5 {offsets = [0, 0], sizes = [16, 8], strides = [1, 1]} : vector<16x96xf32> to vector<16x8xf32>
    %7 = vector.extract_strided_slice %5 {offsets = [0, 8], sizes = [16, 8], strides = [1, 1]} : vector<16x96xf32> to vector<16x8xf32>
    %8 = vector.extract_strided_slice %5 {offsets = [0, 16], sizes = [16, 8], strides = [1, 1]} : vector<16x96xf32> to vector<16x8xf32>
    %9 = vector.extract_strided_slice %5 {offsets = [0, 24], sizes = [16, 8], strides = [1, 1]} : vector<16x96xf32> to vector<16x8xf32>
    %10 = vector.shape_cast %6 : vector<16x8xf32> to vector<1x16x8xf32>
    %11 = vector.shape_cast %7 : vector<16x8xf32> to vector<1x16x8xf32>
    %12 = vector.shape_cast %8 : vector<16x8xf32> to vector<1x16x8xf32>
    %13 = vector.shape_cast %9 : vector<16x8xf32> to vector<1x16x8xf32>
    %14 = tpu.concatenate %10, %11, %12, %13 in 0 : vector<1x16x8xf32>, vector<1x16x8xf32>, vector<1x16x8xf32>, vector<1x16x8xf32> -> vector<4x16x8xf32>
    %15 = vector.extract_strided_slice %5 {offsets = [0, 32], sizes = [16, 8], strides = [1, 1]} : vector<16x96xf32> to vector<16x8xf32>
    %16 = vector.extract_strided_slice %5 {offsets = [0, 40], sizes = [16, 8], strides = [1, 1]} : vector<16x96xf32> to vector<16x8xf32>
    %17 = vector.extract_strided_slice %5 {offsets = [0, 48], sizes = [16, 8], strides = [1, 1]} : vector<16x96xf32> to vector<16x8xf32>
    %18 = vector.extract_strided_slice %5 {offsets = [0, 56], sizes = [16, 8], strides = [1, 1]} : vector<16x96xf32> to vector<16x8xf32>
    %19 = vector.shape_cast %15 : vector<16x8xf32> to vector<1x16x8xf32>
    %20 = vector.shape_cast %16 : vector<16x8xf32> to vector<1x16x8xf32>
    %21 = vector.shape_cast %17 : vector<16x8xf32> to vector<1x16x8xf32>
    %22 = vector.shape_cast %18 : vector<16x8xf32> to vector<1x16x8xf32>
    %23 = tpu.concatenate %19, %20, %21, %22 in 0 : vector<1x16x8xf32>, vector<1x16x8xf32>, vector<1x16x8xf32>, vector<1x16x8xf32> -> vector<4x16x8xf32>
    %24 = vector.extract_strided_slice %5 {offsets = [0, 64], sizes = [16, 8], strides = [1, 1]} : vector<16x96xf32> to vector<16x8xf32>
    %25 = vector.extract_strided_slice %5 {offsets = [0, 72], sizes = [16, 8], strides = [1, 1]} : vector<16x96xf32> to vector<16x8xf32>
    %26 = vector.extract_strided_slice %5 {offsets = [0, 80], sizes = [16, 8], strides = [1, 1]} : vector<16x96xf32> to vector<16x8xf32>
    %27 = vector.extract_strided_slice %5 {offsets = [0, 88], sizes = [16, 8], strides = [1, 1]} : vector<16x96xf32> to vector<16x8xf32>
    %28 = vector.shape_cast %24 : vector<16x8xf32> to vector<1x16x8xf32>
    %29 = vector.shape_cast %25 : vector<16x8xf32> to vector<1x16x8xf32>
    %30 = vector.shape_cast %26 : vector<16x8xf32> to vector<1x16x8xf32>
    %31 = vector.shape_cast %27 : vector<16x8xf32> to vector<1x16x8xf32>
    %32 = tpu.concatenate %28, %29, %30, %31 in 0 : vector<1x16x8xf32>, vector<1x16x8xf32>, vector<1x16x8xf32>, vector<1x16x8xf32> -> vector<4x16x8xf32>
    "tpu.trace_start"() <{level = 10 : i32, message = "hqd,hkd->hqk"}> : () -> ()
    %cst_5 = arith.constant dense<0.000000e+00> : vector<4x16x16xf32>
    %33 = tpu.matmul %14, %23, %cst_5 {dimension_numbers = #tpu.dot_dimension_numbers<[2], [2], [1], [1], [0, 0, 0, 1, 1, 1], [0], [0]>} : vector<4x16x8xf32>, vector<4x16x8xf32>, vector<4x16x16xf32> -> vector<4x16x16xf32>
    "tpu.trace_stop"() : () -> ()
    %c0_6 = arith.constant 0 : index
    %c0_7 = arith.constant 0 : index
    %34 = vector.load %arg5[%c0_6, %c0_7] : memref<16x16xf32, #tpu.memory_space<vmem>>, vector<16x16xf32>
    %35 = vector.shape_cast %34 : vector<16x16xf32> to vector<1x16x16xf32>
    %36 = vector.broadcast %35 : vector<1x16x16xf32> to vector<4x16x16xf32>
    %37 = arith.addf %33, %36 : vector<4x16x16xf32>
    %cst_8 = arith.constant dense<0xFF800000> : vector<4x16xf32>
    %38 = vector.multi_reduction <maximumf>, %37, %cst_8 [2] : vector<4x16x16xf32> to vector<4x16xf32>
    %39 = vector.shape_cast %38 : vector<4x16xf32> to vector<4x16x1xf32>
    %40 = vector.broadcast %39 : vector<4x16x1xf32> to vector<4x16x16xf32>
    %41 = arith.subf %37, %40 : vector<4x16x16xf32>
    %42 = math.exp %41 : vector<4x16x16xf32>
    %cst_9 = arith.constant dense<0.000000e+00> : vector<4x16xf32>
    %43 = vector.multi_reduction <add>, %42, %cst_9 [2] : vector<4x16x16xf32> to vector<4x16xf32>
    %44 = vector.shape_cast %43 : vector<4x16xf32> to vector<4x16x1xf32>
    %45 = tpu.reciprocal %44 : vector<4x16x1xf32> -> vector<4x16x1xf32>
    %46 = vector.broadcast %45 : vector<4x16x1xf32> to vector<4x16x16xf32>
    %47 = arith.mulf %42, %46 : vector<4x16x16xf32>
    "tpu.trace_start"() <{level = 10 : i32, message = "hqk,hkd->hqd"}> : () -> ()
    %cst_10 = arith.constant dense<0.000000e+00> : vector<4x16x8xf32>
    %48 = tpu.matmul %47, %32, %cst_10 {dimension_numbers = #tpu.dot_dimension_numbers<[2], [1], [1], [2], [0, 0, 0, 1, 1, 2], [0], [0]>} : vector<4x16x16xf32>, vector<4x16x8xf32>, vector<4x16x8xf32> -> vector<4x16x8xf32>
    "tpu.trace_stop"() : () -> ()
    %c0_11 = arith.constant 0 : index
    %c0_12 = arith.constant 0 : index
    %c0_13 = arith.constant 0 : index
    %49 = vector.load %arg3[%c0_11, %c0_12, %c0_13] : memref<4x8x32xf32, #tpu.memory_space<vmem>>, vector<4x8x32xf32>
    "tpu.trace_start"() <{level = 10 : i32, message = "hqd,hde->hqe"}> : () -> ()
    %cst_14 = arith.constant dense<0.000000e+00> : vector<4x16x32xf32>
    %50 = tpu.matmul %48, %49, %cst_14 {dimension_numbers = #tpu.dot_dimension_numbers<[2], [1], [1], [2], [0, 0, 0, 1, 1, 2], [0], [0]>} : vector<4x16x8xf32>, vector<4x8x32xf32>, vector<4x16x32xf32> -> vector<4x16x32xf32>
    "tpu.trace_stop"() : () -> ()
    %cst_15 = arith.constant dense<0.000000e+00> : vector<16x32xf32>
    %51 = vector.multi_reduction <add>, %50, %cst_15 [0] : vector<4x16x32xf32> to vector<16x32xf32>
    %c0_16 = arith.constant 0 : index
    %c0_17 = arith.constant 0 : index
    %52 = vector.load %arg4[%c0_16, %c0_17] : memref<1x32xf32, #tpu.memory_space<vmem>>, vector<1x32xf32>
    %53 = vector.broadcast %52 : vector<1x32xf32> to vector<16x32xf32>
    %54 = arith.addf %51, %53 : vector<16x32xf32>
    %c0_18 = arith.constant 0 : index
    %c0_19 = arith.constant 0 : index
    %55 = vector.load %arg6[%c0_18, %c0_19] : memref<16x32xf32, #tpu.memory_space<vmem>>, vector<16x32xf32>
    tpu.vector_store %arg6[%c0_18, %c0_19], %54 {strides = array<i32>} : memref<16x32xf32, #tpu.memory_space<vmem>>, vector<16x32xf32>,
    return
  }
}

</mosaic_0001>

<llo_original>
// kernel: multi_head_attention.1
$region0: #{multi_head_attention.1}
  #allocation0 [shape = 'u32[]', space=smem, size = 0x4, offset = 0x4, fixed_abs, tag = 'smem constant byte address 0x4 - core index']
  #allocation1 [shape = 'u32[144,128]{1,0:T(1,128)}', space=vmem, size = 0x12000, scoped, tag = 'internal scratch']
  %s0 = inlined_call_operand.vmem [shape: f32[16,32], index: 0, kind: input, shape index: {}]
  %s1 = inlined_call_operand.vmem [shape: f32[32,96], index: 1, kind: input, shape index: {}]
  %s2 = inlined_call_operand.vmem [shape: f32[1,96], index: 2, kind: input, shape index: {}]
  %s3 = inlined_call_operand.vmem [shape: f32[4,8,32], index: 3, kind: input, shape index: {}]
  %s4 = inlined_call_operand.vmem [shape: f32[1,32], index: 4, kind: input, shape index: {}]
  %s5 = inlined_call_operand.vmem [shape: f32[16,16], index: 5, kind: input, shape index: {}]
  %s6 = inlined_call_operand.hbm [shape: f32[16,32], index: 6, kind: output, shape index: {}]
  %s7 = sld [smem:[#allocation0]]
  $region34: #{multi_head_attention.1} parent=0
    _
  %s9 = ssub.s32 1, %s7
  %s10 = scalar_select 0, %s9, %s7
  $region1: #{multi_head_attention.1} parent=0
    #allocation2 [shape = 'u8[8192]{0}', space=vmem, size = 0x2000, scoped, tag = 'output window, operand 0, single buffered']
    #allocation3 [shape = 's32[1]{0}', space=sflag, size = 0x4, scoped, tag = 'scoped memory for multi_head_attention.1']
    %11 = vsyncpa [#allocation3], 0
    // Predicated region
    $region2: #{multi_head_attention.1} parent=1 // pred_check
      _
    $region3: #{multi_head_attention.1} parent=1 // pred_check_branch
      %13 = sbr.rel (0) target = $region5
    $region4: #{multi_head_attention.1} parent=1 // pred_region
      _
    $region5: #{multi_head_attention.1} parent=1 // pred_fallthru
      _
    // Predicated region
    $region6: #{multi_head_attention.1} parent=1 // pred_check
      _
    $region7: #{multi_head_attention.1} parent=1 // pred_check_branch
      %15 = sbr.rel (0) target = $region9
    $region8: #{multi_head_attention.1} parent=1 // pred_region
      _
    $region9: #{multi_head_attention.1} parent=1 // pred_fallthru
      _
    // Predicated region
    $region10: #{multi_head_attention.1} parent=1 // pred_check
      _
    $region11: #{multi_head_attention.1} parent=1 // pred_check_branch
      %17 = sbr.rel (0) target = $region13
    $region12: #{multi_head_attention.1} parent=1 // pred_region
      _
    $region13: #{multi_head_attention.1} parent=1 // pred_fallthru
      _
    // Predicated region
    $region14: #{multi_head_attention.1} parent=1 // pred_check
      _
    $region15: #{multi_head_attention.1} parent=1 // pred_check_branch
      %19 = sbr.rel (0) target = $region17
    $region16: #{multi_head_attention.1} parent=1 // pred_region
      _
    $region17: #{multi_head_attention.1} parent=1 // pred_fallthru
      _
    // Predicated region
    $region18: #{multi_head_attention.1} parent=1 // pred_check
      _
    $region19: #{multi_head_attention.1} parent=1 // pred_check_branch
      %21 = sbr.rel (0) target = $region21
    $region20: #{multi_head_attention.1} parent=1 // pred_region
      _
    $region21: #{multi_head_attention.1} parent=1 // pred_fallthru
      _
    // Predicated region
    $region22: #{multi_head_attention.1} parent=1 // pred_check
      _
    $region23: #{multi_head_attention.1} parent=1 // pred_check_branch
      %23 = sbr.rel (0) target = $region25
    $region24: #{multi_head_attention.1} parent=1 // pred_region
      _
    $region25: #{multi_head_attention.1} parent=1 // pred_fallthru
      _
    %v24 = vld [vmem:[%s0] sm:$0xff]
    %v25 = vld [vmem:[%s0 + $0x8] sm:$0xff]
    %v26 = vld [vmem:[%s1] sm:$0xff]
    %v27 = vld [vmem:[%s1 + $0x8] sm:$0xff]
    %v28 = vld [vmem:[%s1 + $0x10] sm:$0xff]
    %v29 = vld [vmem:[%s1 + $0x18] sm:$0xff]
    %v30 = vld [vmem:[%s2] sm:$0x1]
    %v32 = vlaneseq
    %v33 = vshrl.u32 %v32, 7
    %v34 = vsub.s32 0, %v33
    %v35 = vrot.slane %v30, %v34
    %vm37 = vcmask 261120
    %v39 = vsel %vm37, %v24, 0
    %v42 = vsel %vm37, %v25, 0
    %44 = vmatprep.subr.mxu0 0.0
    %45 = vmatpush1.msra.mxu0 %v26
    %46 = vmatprep.subr.mxu0 0.0
    %47 = vmatpush1.msra.mxu0 %v27
    %48 = vmatprep.subr.mxu0 0.0
    %49 = vmatpush1.msra.mxu0 %v28
    %50 = vmatprep.subr.mxu0 0.0
    %51 = vmatpush1.msra.mxu0 %v29
    %52 = vmatprep.subr.mxu0 0.0
    %53 = vmatpush1.msra.mxu0 0.0
    %54 = vmatprep.subr.mxu0 0.0
    %55 = vmatpush1.msra.mxu0 0.0
    %56 = vmatprep.subr.mxu0 0.0
    %57 = vmatpush1.msra.mxu0 0.0
    %58 = vmatprep.subr.mxu0 0.0
    %59 = vmatpush1.msra.mxu0 0.0
    %60 = vmatprep.subr.mxu0 0.0
    %61 = vmatpush1.msra.mxu0 0.0
    %62 = vmatprep.subr.mxu0 0.0
    %63 = vmatpush1.msra.mxu0 0.0
    %64 = vmatprep.subr.mxu0 0.0
    %65 = vmatpush1.msra.mxu0 0.0
    %66 = vmatprep.subr.mxu0 0.0
    %67 = vmatpush1.msra.mxu0 0.0
    %68 = vmatprep.subr.mxu0 0.0
    %69 = vmatpush1.msra.mxu0 0.0
    %70 = vmatprep.subr.mxu0 0.0
    %71 = vmatpush1.msra.mxu0 0.0
    %72 = vmatprep.subr.mxu0 0.0
    %73 = vmatpush1.msra.mxu0 0.0
    %74 = vmatprep.subr.mxu0 0.0
    %75 = vmatpush1.msra.mxu0 0.0
    %76 = vmatprep.subr.mxu0 0.0
    %77 = vmatpush1.msra.mxu0 0.0
    %78 = vmatprep.subr.mxu0 0.0
    %79 = vmatpush1.msra.mxu0 0.0
    %80 = vmatprep.subr.mxu0 0.0
    %81 = vmatpush1.msra.mxu0 0.0
    %82 = vmatprep.subr.mxu0 0.0
    %83 = vmatpush1.msra.mxu0 0.0
    %84 = vmatprep.subr.mxu0 0.0
    %85 = vmatpush1.msra.mxu0 0.0
    %86 = vmatprep.subr.mxu0 0.0
    %87 = vmatpush1.msra.mxu0 0.0
    %88 = vmatprep.subr.mxu0 0.0
    %89 = vmatpush1.msra.mxu0 0.0
    %90 = vmatprep.subr.mxu0 0.0
    %91 = vmatpush1.msra.mxu0 0.0
    %92 = vmatprep.subr.mxu0 0.0
    %93 = vmatpush1.msra.mxu0 0.0
    %94 = vmatprep.subr.mxu0 0.0
    %95 = vmatpush1.msra.mxu0 0.0
    %96 = vmatprep.subr.mxu0 0.0
    %97 = vmatpush1.msra.mxu0 0.0
    %98 = vmatprep.subr.mxu0 0.0
    %99 = vmatpush1.msra.mxu0 0.0
    %100 = vmatprep.subr.mxu0 0.0
    %101 = vmatpush1.msra.mxu0 0.0
    %102 = vmatprep.subr.mxu0 0.0
    %103 = vmatpush1.msra.mxu0 0.0
    %104 = vmatprep.subr.mxu0 0.0
    %105 = vmatpush1.msra.mxu0 0.0
    %106 = vmatprep.subr.mxu0 0.0
    %107 = vmatpush1.msra.mxu0 0.0
    %108 = vmatprep.mubr.f32.mxu0 0.0
    %109 = vmatmul.mubr.f32.gmra.mrb[0].mxu0 %v39
    %v110 = vpop.f32.mrb[0].mxu0
    %v111 = vadd.f32 %v35, %v110
    %v112 = vpop.f32.mrb[0].mxu0
    %113 = vmatprep.mubr.f32.mxu0 0.0
    %114 = vmatmul.mubr.f32.gmra.mrb[0].mxu0 %v42
    %v115 = vpop.f32.mrb[0].mxu0
    %v116 = vadd.f32 %v35, %v115
    %v117 = vpop.f32.mrb[0].mxu0
    %118 = vdwg.mxu0
    %121 = vrot.lane.b32.xlu0 %v111, 120
    %v122 = vpop.permute.xlu0 %121
    %123 = vrot.lane.b32.xlu0 %v116, 120
    %v124 = vpop.permute.xlu0 %123
    %125 = vrot.lane.b32.xlu0 %v111, 112
    %v126 = vpop.permute.xlu0 %125
    %127 = vrot.lane.b32.xlu0 %v116, 112
    %v128 = vpop.permute.xlu0 %127
    %129 = vrot.lane.b32.xlu0 %v111, 104
    %v130 = vpop.permute.xlu0 %129
    %131 = vrot.lane.b32.xlu0 %v116, 104
    %v132 = vpop.permute.xlu0 %131
    %v133 = vld [vmem:[%s5] sm:$0xff]
    %v134 = vld [vmem:[%s5 + $0x8] sm:$0xff]
    %135 = vrot.lane.b32.xlu0 %v111, 96
    %v136 = vpop.permute.xlu0 %135
    %137 = vrot.lane.b32.xlu0 %v116, 96
    %v138 = vpop.permute.xlu0 %137
    %vm139 = vcmask 64512
    %v140 = vsel %vm139, %v111, 0
    %v142 = vsel %vm139, %v116, 0
    %v144 = vsel %vm139, %v136, 0
    %v146 = vsel %vm139, %v138, 0
    %148 = vmatprep.subr.mxu0 0.0
    %149 = vmatpush1.xpose.msra.mxu0 %v144
    %150 = vmatprep.subr.mxu0 0.0
    %151 = vmatpush1.xpose.msra.mxu0 %v146
    %152 = vmatprep.subr.mxu0 0.0
    %153 = vmatpush1.xpose.msra.mxu0 0.0
    %154 = vmatprep.subr.mxu0 0.0
    %155 = vmatpush1.xpose.msra.mxu0 0.0
    %156 = vmatprep.subr.mxu0 0.0
    %157 = vmatpush1.xpose.msra.mxu0 0.0
    %158 = vmatprep.subr.mxu0 0.0
    %159 = vmatpush1.xpose.msra.mxu0 0.0
    %160 = vmatprep.subr.mxu0 0.0
    %161 = vmatpush1.xpose.msra.mxu0 0.0
    %162 = vmatprep.subr.mxu0 0.0
    %163 = vmatpush1.xpose.msra.mxu0 0.0
    %164 = vmatprep.subr.mxu0 0.0
    %165 = vmatpush1.xpose.msra.mxu0 0.0
    %166 = vmatprep.subr.mxu0 0.0
    %167 = vmatpush1.xpose.msra.mxu0 0.0
    %168 = vmatprep.subr.mxu0 0.0
    %169 = vmatpush1.xpose.msra.mxu0 0.0
    %170 = vmatprep.subr.mxu0 0.0
    %171 = vmatpush1.xpose.msra.mxu0 0.0
    %172 = vmatprep.subr.mxu0 0.0
    %173 = vmatpush1.xpose.msra.mxu0 0.0
    %174 = vmatprep.subr.mxu0 0.0
    %175 = vmatpush1.xpose.msra.mxu0 0.0
    %176 = vmatprep.subr.mxu0 0.0
    %177 = vmatpush1.xpose.msra.mxu0 0.0
    %178 = vmatprep.subr.mxu0 0.0
    %179 = vmatpush1.xpose.msra.mxu0 0.0
    %180 = vmatprep.subr.mxu0 0.0
    %181 = vmatpush1.xpose.msra.mxu0 0.0
    %182 = vmatprep.subr.mxu0 0.0
    %183 = vmatpush1.xpose.msra.mxu0 0.0
    %184 = vmatprep.subr.mxu0 0.0
    %185 = vmatpush1.xpose.msra.mxu0 0.0
    %186 = vmatprep.subr.mxu0 0.0
    %187 = vmatpush1.xpose.msra.mxu0 0.0
    %188 = vmatprep.subr.mxu0 0.0
    %189 = vmatpush1.xpose.msra.mxu0 0.0
    %190 = vmatprep.subr.mxu0 0.0
    %191 = vmatpush1.xpose.msra.mxu0 0.0
    %192 = vmatprep.subr.mxu0 0.0
    %193 = vmatpush1.xpose.msra.mxu0 0.0
    %194 = vmatprep.subr.mxu0 0.0
    %195 = vmatpush1.xpose.msra.mxu0 0.0
    %196 = vmatprep.subr.mxu0 0.0
    %197 = vmatpush1.xpose.msra.mxu0 0.0
    %198 = vmatprep.subr.mxu0 0.0
    %199 = vmatpush1.xpose.msra.mxu0 0.0
    %200 = vmatprep.subr.mxu0 0.0
    %201 = vmatpush1.xpose.msra.mxu0 0.0
    %202 = vmatprep.subr.mxu0 0.0
    %203 = vmatpush1.xpose.msra.mxu0 0.0
    %204 = vmatprep.subr.mxu0 0.0
    %205 = vmatpush1.xpose.msra.mxu0 0.0
    %206 = vmatprep.subr.mxu0 0.0
    %207 = vmatpush1.xpose.msra.mxu0 0.0
    %208 = vmatprep.subr.mxu0 0.0
    %209 = vmatpush1.xpose.msra.mxu0 0.0
    %210 = vmatprep.subr.mxu0 0.0
    %211 = vmatpush1.xpose.msra.mxu0 0.0
    %212 = vmatprep.mubr.f32.mxu0 0.0
    %213 = vmatmul.mubr.f32.gmra.mrb[0].mxu0 %v140
    %v214 = vpop.f32.mrb[0].mxu0
    %v215 = vadd.f32 %v133, %v214
    %v216 = vpop.f32.mrb[0].mxu0
    %217 = vmatprep.mubr.f32.mxu0 0.0
    %218 = vmatmul.mubr.f32.gmra.mrb[0].mxu0 %v142
    %v219 = vpop.f32.mrb[0].mxu0
    %v220 = vadd.f32 %v134, %v219
    %v221 = vpop.f32.mrb[0].mxu0
    %222 = vdwg.mxu0
    %223 = vrot.lane.b32.xlu0 %v122, 96
    %v224 = vpop.permute.xlu0 %223
    %225 = vrot.lane.b32.xlu0 %v124, 96
    %v226 = vpop.permute.xlu0 %225
    %v227 = vsel %vm139, %v122, 0
    %v229 = vsel %vm139, %v124, 0
    %v231 = vsel %vm139, %v224, 0
    %v233 = vsel %vm139, %v226, 0
    %235 = vmatprep.subr.mxu0 0.0
    %236 = vmatpush1.xpose.msra.mxu0 %v231
    %237 = vmatprep.subr.mxu0 0.0
    %238 = vmatpush1.xpose.msra.mxu0 %v233
    %239 = vmatprep.subr.mxu0 0.0
    %240 = vmatpush1.xpose.msra.mxu0 0.0
    %241 = vmatprep.subr.mxu0 0.0
    %242 = vmatpush1.xpose.msra.mxu0 0.0
    %243 = vmatprep.subr.mxu0 0.0
    %244 = vmatpush1.xpose.msra.mxu0 0.0
    %245 = vmatprep.subr.mxu0 0.0
    %246 = vmatpush1.xpose.msra.mxu0 0.0
    %247 = vmatprep.subr.mxu0 0.0
    %248 = vmatpush1.xpose.msra.mxu0 0.0
    %249 = vmatprep.subr.mxu0 0.0
    %250 = vmatpush1.xpose.msra.mxu0 0.0
    %251 = vmatprep.subr.mxu0 0.0
    %252 = vmatpush1.xpose.msra.mxu0 0.0
    %253 = vmatprep.subr.mxu0 0.0
    %254 = vmatpush1.xpose.msra.mxu0 0.0
    %255 = vmatprep.subr.mxu0 0.0
    %256 = vmatpush1.xpose.msra.mxu0 0.0
    %257 = vmatprep.subr.mxu0 0.0
    %258 = vmatpush1.xpose.msra.mxu0 0.0
    %259 = vmatprep.subr.mxu0 0.0
    %260 = vmatpush1.xpose.msra.mxu0 0.0
    %261 = vmatprep.subr.mxu0 0.0
    %262 = vmatpush1.xpose.msra.mxu0 0.0
    %263 = vmatprep.subr.mxu0 0.0
    %264 = vmatpush1.xpose.msra.mxu0 0.0
    %265 = vmatprep.subr.mxu0 0.0
    %266 = vmatpush1.xpose.msra.mxu0 0.0
    %267 = vmatprep.subr.mxu0 0.0
    %268 = vmatpush1.xpose.msra.mxu0 0.0
    %269 = vmatprep.subr.mxu0 0.0
    %270 = vmatpush1.xpose.msra.mxu0 0.0
    %271 = vmatprep.subr.mxu0 0.0
    %272 = vmatpush1.xpose.msra.mxu0 0.0
    %273 = vmatprep.subr.mxu0 0.0
    %274 = vmatpush1.xpose.msra.mxu0 0.0
    %275 = vmatprep.subr.mxu0 0.0
    %276 = vmatpush1.xpose.msra.mxu0 0.0
    %277 = vmatprep.subr.mxu0 0.0
    %278 = vmatpush1.xpose.msra.mxu0 0.0
    %279 = vmatprep.subr.mxu0 0.0
    %280 = vmatpush1.xpose.msra.mxu0 0.0
    %281 = vmatprep.subr.mxu0 0.0
    %282 = vmatpush1.xpose.msra.mxu0 0.0
    %283 = vmatprep.subr.mxu0 0.0
    %284 = vmatpush1.xpose.msra.mxu0 0.0
    %285 = vmatprep.subr.mxu0 0.0
    %286 = vmatpush1.xpose.msra.mxu0 0.0
    %287 = vmatprep.subr.mxu0 0.0
    %288 = vmatpush1.xpose.msra.mxu0 0.0
    %289 = vmatprep.subr.mxu0 0.0
    %290 = vmatpush1.xpose.msra.mxu0 0.0
    %291 = vmatprep.subr.mxu0 0.0
    %292 = vmatpush1.xpose.msra.mxu0 0.0
    %293 = vmatprep.subr.mxu0 0.0
    %294 = vmatpush1.xpose.msra.mxu0 0.0
    %295 = vmatprep.subr.mxu0 0.0
    %296 = vmatpush1.xpose.msra.mxu0 0.0
    %297 = vmatprep.subr.mxu0 0.0
    %298 = vmatpush1.xpose.msra.mxu0 0.0
    %299 = vmatprep.mubr.f32.mxu0 0.0
    %300 = vmatmul.mubr.f32.gmra.mrb[0].mxu0 %v227
    %v301 = vpop.f32.mrb[0].mxu0
    %v302 = vadd.f32 %v133, %v301
    %v303 = vpop.f32.mrb[0].mxu0
    %304 = vmatprep.mubr.f32.mxu0 0.0
    %305 = vmatmul.mubr.f32.gmra.mrb[0].mxu0 %v229
    %v306 = vpop.f32.mrb[0].mxu0
    %v307 = vadd.f32 %v134, %v306
    %v308 = vpop.f32.mrb[0].mxu0
    %309 = vdwg.mxu0
    %310 = vrot.lane.b32.xlu0 %v126, 96
    %v311 = vpop.permute.xlu0 %310
    %312 = vrot.lane.b32.xlu0 %v128, 96
    %v313 = vpop.permute.xlu0 %312
    %v314 = vsel %vm139, %v126, 0
    %v316 = vsel %vm139, %v128, 0
    %v318 = vsel %vm139, %v311, 0
    %v320 = vsel %vm139, %v313, 0
    %322 = vmatprep.subr.mxu0 0.0
    %323 = vmatpush1.xpose.msra.mxu0 %v318
    %324 = vmatprep.subr.mxu0 0.0
    %325 = vmatpush1.xpose.msra.mxu0 %v320
    %326 = vmatprep.subr.mxu0 0.0
    %327 = vmatpush1.xpose.msra.mxu0 0.0
    %328 = vmatprep.subr.mxu0 0.0
    %329 = vmatpush1.xpose.msra.mxu0 0.0
    %330 = vmatprep.subr.mxu0 0.0
    %331 = vmatpush1.xpose.msra.mxu0 0.0
    %332 = vmatprep.subr.mxu0 0.0
    %333 = vmatpush1.xpose.msra.mxu0 0.0
    %334 = vmatprep.subr.mxu0 0.0
    %335 = vmatpush1.xpose.msra.mxu0 0.0
    %336 = vmatprep.subr.mxu0 0.0
    %337 = vmatpush1.xpose.msra.mxu0 0.0
    %338 = vmatprep.subr.mxu0 0.0
    %339 = vmatpush1.xpose.msra.mxu0 0.0
    %340 = vmatprep.subr.mxu0 0.0
    %341 = vmatpush1.xpose.msra.mxu0 0.0
    %342 = vmatprep.subr.mxu0 0.0
    %343 = vmatpush1.xpose.msra.mxu0 0.0
    %344 = vmatprep.subr.mxu0 0.0
    %345 = vmatpush1.xpose.msra.mxu0 0.0
    %346 = vmatprep.subr.mxu0 0.0
    %347 = vmatpush1.xpose.msra.mxu0 0.0
    %348 = vmatprep.subr.mxu0 0.0
    %349 = vmatpush1.xpose.msra.mxu0 0.0
    %350 = vmatprep.subr.mxu0 0.0
    %351 = vmatpush1.xpose.msra.mxu0 0.0
    %352 = vmatprep.subr.mxu0 0.0
    %353 = vmatpush1.xpose.msra.mxu0 0.0
    %354 = vmatprep.subr.mxu0 0.0
    %355 = vmatpush1.xpose.msra.mxu0 0.0
    %356 = vmatprep.subr.mxu0 0.0
    %357 = vmatpush1.xpose.msra.mxu0 0.0
    %358 = vmatprep.subr.mxu0 0.0
    %359 = vmatpush1.xpose.msra.mxu0 0.0
    %360 = vmatprep.subr.mxu0 0.0
    %361 = vmatpush1.xpose.msra.mxu0 0.0
    %362 = vmatprep.subr.mxu0 0.0
    %363 = vmatpush1.xpose.msra.mxu0 0.0
    %364 = vmatprep.subr.mxu0 0.0
    %365 = vmatpush1.xpose.msra.mxu0 0.0
    %366 = vmatprep.subr.mxu0 0.0
    %367 = vmatpush1.xpose.msra.mxu0 0.0
    %368 = vmatprep.subr.mxu0 0.0
    %369 = vmatpush1.xpose.msra.mxu0 0.0
    %370 = vmatprep.subr.mxu0 0.0
    %371 = vmatpush1.xpose.msra.mxu0 0.0
    %372 = vmatprep.subr.mxu0 0.0
    %373 = vmatpush1.xpose.msra.mxu0 0.0
    %374 = vmatprep.subr.mxu0 0.0
    %375 = vmatpush1.xpose.msra.mxu0 0.0
    %376 = vmatprep.subr.mxu0 0.0
    %377 = vmatpush1.xpose.msra.mxu0 0.0
    %378 = vmatprep.subr.mxu0 0.0
    %379 = vmatpush1.xpose.msra.mxu0 0.0
    %380 = vmatprep.subr.mxu0 0.0
    %381 = vmatpush1.xpose.msra.mxu0 0.0
    %382 = vmatprep.subr.mxu0 0.0
    %383 = vmatpush1.xpose.msra.mxu0 0.0
    %384 = vmatprep.subr.mxu0 0.0
    %385 = vmatpush1.xpose.msra.mxu0 0.0
    %386 = vmatprep.mubr.f32.mxu0 0.0
    %387 = vmatmul.mubr.f32.gmra.mrb[0].mxu0 %v314
    %v388 = vpop.f32.mrb[0].mxu0
    %v389 = vadd.f32 %v133, %v388
    %v390 = vpop.f32.mrb[0].mxu0
    %391 = vmatprep.mubr.f32.mxu0 0.0
    %392 = vmatmul.mubr.f32.gmra.mrb[0].mxu0 %v316
    %v393 = vpop.f32.mrb[0].mxu0
    %v394 = vadd.f32 %v134, %v393
    %v395 = vpop.f32.mrb[0].mxu0
    %396 = vdwg.mxu0
    %397 = vrot.lane.b32.xlu0 %v130, 96
    %v398 = vpop.permute.xlu0 %397
    %399 = vrot.lane.b32.xlu0 %v132, 96
    %v400 = vpop.permute.xlu0 %399
    %v401 = vsel %vm139, %v130, 0
    %v403 = vsel %vm139, %v132, 0
    %v405 = vsel %vm139, %v398, 0
    %v407 = vsel %vm139, %v400, 0
    %409 = vmatprep.subr.mxu0 0.0
    %410 = vmatpush1.xpose.msra.mxu0 %v405
    %411 = vmatprep.subr.mxu0 0.0
    %412 = vmatpush1.xpose.msra.mxu0 %v407
    %413 = vmatprep.subr.mxu0 0.0
    %414 = vmatpush1.xpose.msra.mxu0 0.0
    %415 = vmatprep.subr.mxu0 0.0
    %416 = vmatpush1.xpose.msra.mxu0 0.0
    %417 = vmatprep.subr.mxu0 0.0
    %418 = vmatpush1.xpose.msra.mxu0 0.0
    %419 = vmatprep.subr.mxu0 0.0
    %420 = vmatpush1.xpose.msra.mxu0 0.0
    %421 = vmatprep.subr.mxu0 0.0
    %422 = vmatpush1.xpose.msra.mxu0 0.0
    %423 = vmatprep.subr.mxu0 0.0
    %424 = vmatpush1.xpose.msra.mxu0 0.0
    %425 = vmatprep.subr.mxu0 0.0
    %426 = vmatpush1.xpose.msra.mxu0 0.0
    %427 = vmatprep.subr.mxu0 0.0
    %428 = vmatpush1.xpose.msra.mxu0 0.0
    %429 = vmatprep.subr.mxu0 0.0
    %430 = vmatpush1.xpose.msra.mxu0 0.0
    %431 = vmatprep.subr.mxu0 0.0
    %432 = vmatpush1.xpose.msra.mxu0 0.0
    %433 = vmatprep.subr.mxu0 0.0
    %434 = vmatpush1.xpose.msra.mxu0 0.0
    %435 = vmatprep.subr.mxu0 0.0
    %436 = vmatpush1.xpose.msra.mxu0 0.0
    %437 = vmatprep.subr.mxu0 0.0
    %438 = vmatpush1.xpose.msra.mxu0 0.0
    %439 = vmatprep.subr.mxu0 0.0
    %440 = vmatpush1.xpose.msra.mxu0 0.0
    %441 = vmatprep.subr.mxu0 0.0
    %442 = vmatpush1.xpose.msra.mxu0 0.0
    %443 = vmatprep.subr.mxu0 0.0
    %444 = vmatpush1.xpose.msra.mxu0 0.0
    %445 = vmatprep.subr.mxu0 0.0
    %446 = vmatpush1.xpose.msra.mxu0 0.0
    %447 = vmatprep.subr.mxu0 0.0
    %448 = vmatpush1.xpose.msra.mxu0 0.0
    %449 = vmatprep.subr.mxu0 0.0
    %450 = vmatpush1.xpose.msra.mxu0 0.0
    %451 = vmatprep.subr.mxu0 0.0
    %452 = vmatpush1.xpose.msra.mxu0 0.0
    %453 = vmatprep.subr.mxu0 0.0
    %454 = vmatpush1.xpose.msra.mxu0 0.0
    %455 = vmatprep.subr.mxu0 0.0
    %456 = vmatpush1.xpose.msra.mxu0 0.0
    %457 = vmatprep.subr.mxu0 0.0
    %458 = vmatpush1.xpose.msra.mxu0 0.0
    %459 = vmatprep.subr.mxu0 0.0
    %460 = vmatpush1.xpose.msra.mxu0 0.0
    %461 = vmatprep.subr.mxu0 0.0
    %462 = vmatpush1.xpose.msra.mxu0 0.0
    %463 = vmatprep.subr.mxu0 0.0
    %464 = vmatpush1.xpose.msra.mxu0 0.0
    %465 = vmatprep.subr.mxu0 0.0
    %466 = vmatpush1.xpose.msra.mxu0 0.0
    %467 = vmatprep.subr.mxu0 0.0
    %468 = vmatpush1.xpose.msra.mxu0 0.0
    %469 = vmatprep.subr.mxu0 0.0
    %470 = vmatpush1.xpose.msra.mxu0 0.0
    %471 = vmatprep.subr.mxu0 0.0
    %472 = vmatpush1.xpose.msra.mxu0 0.0
    %473 = vmatprep.mubr.f32.mxu0 0.0
    %474 = vmatmul.mubr.f32.gmra.mrb[0].mxu0 %v401
    %v475 = vpop.f32.mrb[0].mxu0
    %v476 = vadd.f32 %v133, %v475
    %v477 = vpop.f32.mrb[0].mxu0
    %478 = vmatprep.mubr.f32.mxu0 0.0
    %479 = vmatmul.mubr.f32.gmra.mrb[0].mxu0 %v403
    %v480 = vpop.f32.mrb[0].mxu0
    %v481 = vadd.f32 %v134, %v480
    %v482 = vpop.f32.mrb[0].mxu0
    %483 = vdwg.mxu0
    %vm484 = vcmask 130048
    %v485 = vsel %vm484, %v215, -inf
    %486 = vmax.xlane.f32.xlu0 %v485
    %v487 = vpop.xlane.xlu0 %486
    %v488 = vsel %vm484, %v220, -inf
    %489 = vmax.xlane.f32.xlu0 %v488
    %v490 = vpop.xlane.xlu0 %489
    %v491 = vsel %vm484, %v302, -inf
    %492 = vmax.xlane.f32.xlu0 %v491
    %v493 = vpop.xlane.xlu0 %492
    %v494 = vsel %vm484, %v307, -inf
    %495 = vmax.xlane.f32.xlu0 %v494
    %v496 = vpop.xlane.xlu0 %495
    %v497 = vsel %vm484, %v389, -inf
    %498 = vmax.xlane.f32.xlu0 %v497
    %v499 = vpop.xlane.xlu0 %498
    %v500 = vsel %vm484, %v394, -inf
    %501 = vmax.xlane.f32.xlu0 %v500
    %v502 = vpop.xlane.xlu0 %501
    %v503 = vsel %vm484, %v476, -inf
    %504 = vmax.xlane.f32.xlu0 %v503
    %v505 = vpop.xlane.xlu0 %504
    %v506 = vsel %vm484, %v481, -inf
    %507 = vmax.xlane.f32.xlu0 %v506
    %v508 = vpop.xlane.xlu0 %507
    %v509 = vsub.f32 %v215, %v487
    %v510 = vsub.f32 %v220, %v490
    %v511 = vsub.f32 %v302, %v493
    %v512 = vsub.f32 %v307, %v496
    %v513 = vsub.f32 %v389, %v499
    %v514 = vsub.f32 %v394, %v502
    %v515 = vsub.f32 %v476, %v505
    %v516 = vsub.f32 %v481, %v508
    %v517 = vmul.f32 %v509, 1.442695
    %v518 = vpow.pop %v517
    %v519 = vmul.f32 %v510, 1.442695
    %v520 = vpow.pop %v519
    %v521 = vmul.f32 %v511, 1.442695
    %v522 = vpow.pop %v521
    %v523 = vmul.f32 %v512, 1.442695
    %v524 = vpow.pop %v523
    %v525 = vmul.f32 %v513, 1.442695
    %v526 = vpow.pop %v525
    %v527 = vmul.f32 %v514, 1.442695
    %v528 = vpow.pop %v527
    %v529 = vmul.f32 %v515, 1.442695
    %v530 = vpow.pop %v529
    %v531 = vmul.f32 %v516, 1.442695
    %v532 = vpow.pop %v531
    %v533 = vsel %vm484, %v518, 0.0
    %534 = vadd.xlane.f32.xlu0 %v533
    %v535 = vpop.xlane.xlu0 %534
    %v536 = vsel %vm484, %v520, 0.0
    %537 = vadd.xlane.f32.xlu0 %v536
    %v538 = vpop.xlane.xlu0 %537
    %v539 = vsel %vm484, %v522, 0.0
    %540 = vadd.xlane.f32.xlu0 %v539
    %v541 = vpop.xlane.xlu0 %540
    %v542 = vsel %vm484, %v524, 0.0
    %543 = vadd.xlane.f32.xlu0 %v542
    %v544 = vpop.xlane.xlu0 %543
    %v545 = vsel %vm484, %v526, 0.0
    %546 = vadd.xlane.f32.xlu0 %v545
    %v547 = vpop.xlane.xlu0 %546
    %v548 = vsel %vm484, %v528, 0.0
    %549 = vadd.xlane.f32.xlu0 %v548
    %v550 = vpop.xlane.xlu0 %549
    %v551 = vsel %vm484, %v530, 0.0
    %552 = vadd.xlane.f32.xlu0 %v551
    %v553 = vpop.xlane.xlu0 %552
    %v554 = vsel %vm484, %v532, 0.0
    %555 = vadd.xlane.f32.xlu0 %v554
    %v556 = vpop.xlane.xlu0 %555
    %v557 = vrcp.pop %v535
    %v558 = vrcp.pop %v538
    %v559 = vrcp.pop %v541
    %v560 = vrcp.pop %v544
    %v561 = vrcp.pop %v547
    %v562 = vrcp.pop %v550
    %v563 = vrcp.pop %v553
    %v564 = vrcp.pop %v556
    %v565 = vmul.f32 %v518, %v557
    %v566 = vmul.f32 %v520, %v558
    %v567 = vmul.f32 %v522, %v559
    %v568 = vmul.f32 %v524, %v560
    %v569 = vmul.f32 %v526, %v561
    %v570 = vmul.f32 %v528, %v562
    %v571 = vmul.f32 %v530, %v563
    %v572 = vmul.f32 %v532, %v564
    %573 = vrot.lane.b32.xlu0 %v111, 64
    %v574 = vpop.permute.xlu0 %573
    %575 = vrot.lane.b32.xlu0 %v116, 64
    %v576 = vpop.permute.xlu0 %575
    %v580 = vsel %vm484, %v565, 0
    %v583 = vsel %vm484, %v566, 0
    %585 = vmatprep.subr.mxu0 0.0
    %586 = vmatpush1.msra.mxu0 %v574
    %587 = vmatprep.subr.mxu0 0.0
    %588 = vmatpush1.msra.mxu0 %v576
    %589 = vmatprep.subr.mxu0 0.0
    %590 = vmatpush1.msra.mxu0 0.0
    %591 = vmatprep.subr.mxu0 0.0
    %592 = vmatpush1.msra.mxu0 0.0
    %593 = vmatprep.subr.mxu0 0.0
    %594 = vmatpush1.msra.mxu0 0.0
    %595 = vmatprep.subr.mxu0 0.0
    %596 = vmatpush1.msra.mxu0 0.0
    %597 = vmatprep.subr.mxu0 0.0
    %598 = vmatpush1.msra.mxu0 0.0
    %599 = vmatprep.subr.mxu0 0.0
    %600 = vmatpush1.msra.mxu0 0.0
    %601 = vmatprep.subr.mxu0 0.0
    %602 = vmatpush1.msra.mxu0 0.0
    %603 = vmatprep.subr.mxu0 0.0
    %604 = vmatpush1.msra.mxu0 0.0
    %605 = vmatprep.subr.mxu0 0.0
    %606 = vmatpush1.msra.mxu0 0.0
    %607 = vmatprep.subr.mxu0 0.0
    %608 = vmatpush1.msra.mxu0 0.0
    %609 = vmatprep.subr.mxu0 0.0
    %610 = vmatpush1.msra.mxu0 0.0
    %611 = vmatprep.subr.mxu0 0.0
    %612 = vmatpush1.msra.mxu0 0.0
    %613 = vmatprep.subr.mxu0 0.0
    %614 = vmatpush1.msra.mxu0 0.0
    %615 = vmatprep.subr.mxu0 0.0
    %616 = vmatpush1.msra.mxu0 0.0
    %617 = vmatprep.subr.mxu0 0.0
    %618 = vmatpush1.msra.mxu0 0.0
    %619 = vmatprep.subr.mxu0 0.0
    %620 = vmatpush1.msra.mxu0 0.0
    %621 = vmatprep.subr.mxu0 0.0
    %622 = vmatpush1.msra.mxu0 0.0
    %623 = vmatprep.subr.mxu0 0.0
    %624 = vmatpush1.msra.mxu0 0.0
    %625 = vmatprep.subr.mxu0 0.0
    %626 = vmatpush1.msra.mxu0 0.0
    %627 = vmatprep.subr.mxu0 0.0
    %628 = vmatpush1.msra.mxu0 0.0
    %629 = vmatprep.subr.mxu0 0.0
    %630 = vmatpush1.msra.mxu0 0.0
    %631 = vmatprep.subr.mxu0 0.0
    %632 = vmatpush1.msra.mxu0 0.0
    %633 = vmatprep.subr.mxu0 0.0
    %634 = vmatpush1.msra.mxu0 0.0
    %635 = vmatprep.subr.mxu0 0.0
    %636 = vmatpush1.msra.mxu0 0.0
    %637 = vmatprep.subr.mxu0 0.0
    %638 = vmatpush1.msra.mxu0 0.0
    %639 = vmatprep.subr.mxu0 0.0
    %640 = vmatpush1.msra.mxu0 0.0
    %641 = vmatprep.subr.mxu0 0.0
    %642 = vmatpush1.msra.mxu0 0.0
    %643 = vmatprep.subr.mxu0 0.0
    %644 = vmatpush1.msra.mxu0 0.0
    %645 = vmatprep.subr.mxu0 0.0
    %646 = vmatpush1.msra.mxu0 0.0
    %647 = vmatprep.subr.mxu0 0.0
    %648 = vmatpush1.msra.mxu0 0.0
    %649 = vmatprep.mubr.f32.mxu0 0.0
    %650 = vmatmul.mubr.f32.gmra.mrb[0].mxu0 %v580
    %v651 = vpop.f32.mrb[0].mxu0
    %v652 = vadd.f32 0.0, %v651
    %v653 = vpop.f32.mrb[0].mxu0
    %654 = vmatprep.mubr.f32.mxu0 0.0
    %655 = vmatmul.mubr.f32.gmra.mrb[0].mxu0 %v583
    %v656 = vpop.f32.mrb[0].mxu0
    %v657 = vadd.f32 0.0, %v656
    %v658 = vpop.f32.mrb[0].mxu0
    %659 = vdwg.mxu0
    %660 = vrot.lane.b32.xlu0 %v122, 64
    %v661 = vpop.permute.xlu0 %660
    %662 = vrot.lane.b32.xlu0 %v124, 64
    %v663 = vpop.permute.xlu0 %662
    %v667 = vsel %vm484, %v567, 0
    %v670 = vsel %vm484, %v568, 0
    %672 = vmatprep.subr.mxu0 0.0
    %673 = vmatpush1.msra.mxu0 %v661
    %674 = vmatprep.subr.mxu0 0.0
    %675 = vmatpush1.msra.mxu0 %v663
    %676 = vmatprep.subr.mxu0 0.0
    %677 = vmatpush1.msra.mxu0 0.0
    %678 = vmatprep.subr.mxu0 0.0
    %679 = vmatpush1.msra.mxu0 0.0
    %680 = vmatprep.subr.mxu0 0.0
    %681 = vmatpush1.msra.mxu0 0.0
    %682 = vmatprep.subr.mxu0 0.0
    %683 = vmatpush1.msra.mxu0 0.0
    %684 = vmatprep.subr.mxu0 0.0
    %685 = vmatpush1.msra.mxu0 0.0
    %686 = vmatprep.subr.mxu0 0.0
    %687 = vmatpush1.msra.mxu0 0.0
    %688 = vmatprep.subr.mxu0 0.0
    %689 = vmatpush1.msra.mxu0 0.0
    %690 = vmatprep.subr.mxu0 0.0
    %691 = vmatpush1.msra.mxu0 0.0
    %692 = vmatprep.subr.mxu0 0.0
    %693 = vmatpush1.msra.mxu0 0.0
    %694 = vmatprep.subr.mxu0 0.0
    %695 = vmatpush1.msra.mxu0 0.0
    %696 = vmatprep.subr.mxu0 0.0
    %697 = vmatpush1.msra.mxu0 0.0
    %698 = vmatprep.subr.mxu0 0.0
    %699 = vmatpush1.msra.mxu0 0.0
    %700 = vmatprep.subr.mxu0 0.0
    %701 = vmatpush1.msra.mxu0 0.0
    %702 = vmatprep.subr.mxu0 0.0
    %703 = vmatpush1.msra.mxu0 0.0
    %704 = vmatprep.subr.mxu0 0.0
    %705 = vmatpush1.msra.mxu0 0.0
    %706 = vmatprep.subr.mxu0 0.0
    %707 = vmatpush1.msra.mxu0 0.0
    %708 = vmatprep.subr.mxu0 0.0
    %709 = vmatpush1.msra.mxu0 0.0
    %710 = vmatprep.subr.mxu0 0.0
    %711 = vmatpush1.msra.mxu0 0.0
    %712 = vmatprep.subr.mxu0 0.0
    %713 = vmatpush1.msra.mxu0 0.0
    %714 = vmatprep.subr.mxu0 0.0
    %715 = vmatpush1.msra.mxu0 0.0
    %716 = vmatprep.subr.mxu0 0.0
    %717 = vmatpush1.msra.mxu0 0.0
    %718 = vmatprep.subr.mxu0 0.0
    %719 = vmatpush1.msra.mxu0 0.0
    %720 = vmatprep.subr.mxu0 0.0
    %721 = vmatpush1.msra.mxu0 0.0
    %722 = vmatprep.subr.mxu0 0.0
    %723 = vmatpush1.msra.mxu0 0.0
    %724 = vmatprep.subr.mxu0 0.0
    %725 = vmatpush1.msra.mxu0 0.0
    %726 = vmatprep.subr.mxu0 0.0
    %727 = vmatpush1.msra.mxu0 0.0
    %728 = vmatprep.subr.mxu0 0.0
    %729 = vmatpush1.msra.mxu0 0.0
    %730 = vmatprep.subr.mxu0 0.0
    %731 = vmatpush1.msra.mxu0 0.0
    %732 = vmatprep.subr.mxu0 0.0
    %733 = vmatpush1.msra.mxu0 0.0
    %734 = vmatprep.subr.mxu0 0.0
    %735 = vmatpush1.msra.mxu0 0.0
    %736 = vmatprep.mubr.f32.mxu0 0.0
    %737 = vmatmul.mubr.f32.gmra.mrb[0].mxu0 %v667
    %v738 = vpop.f32.mrb[0].mxu0
    %v739 = vadd.f32 0.0, %v738
    %v740 = vpop.f32.mrb[0].mxu0
    %741 = vmatprep.mubr.f32.mxu0 0.0
    %742 = vmatmul.mubr.f32.gmra.mrb[0].mxu0 %v670
    %v743 = vpop.f32.mrb[0].mxu0
    %v744 = vadd.f32 0.0, %v743
    %v745 = vpop.f32.mrb[0].mxu0
    %746 = vdwg.mxu0
    %747 = vrot.lane.b32.xlu0 %v126, 64
    %v748 = vpop.permute.xlu0 %747
    %749 = vrot.lane.b32.xlu0 %v128, 64
    %v750 = vpop.permute.xlu0 %749
    %v754 = vsel %vm484, %v569, 0
    %v757 = vsel %vm484, %v570, 0
    %759 = vmatprep.subr.mxu0 0.0
    %760 = vmatpush1.msra.mxu0 %v748
    %761 = vmatprep.subr.mxu0 0.0
    %762 = vmatpush1.msra.mxu0 %v750
    %763 = vmatprep.subr.mxu0 0.0
    %764 = vmatpush1.msra.mxu0 0.0
    %765 = vmatprep.subr.mxu0 0.0
    %766 = vmatpush1.msra.mxu0 0.0
    %767 = vmatprep.subr.mxu0 0.0
    %768 = vmatpush1.msra.mxu0 0.0
    %769 = vmatprep.subr.mxu0 0.0
    %770 = vmatpush1.msra.mxu0 0.0
    %771 = vmatprep.subr.mxu0 0.0
    %772 = vmatpush1.msra.mxu0 0.0
    %773 = vmatprep.subr.mxu0 0.0
    %774 = vmatpush1.msra.mxu0 0.0
    %775 = vmatprep.subr.mxu0 0.0
    %776 = vmatpush1.msra.mxu0 0.0
    %777 = vmatprep.subr.mxu0 0.0
    %778 = vmatpush1.msra.mxu0 0.0
    %779 = vmatprep.subr.mxu0 0.0
    %780 = vmatpush1.msra.mxu0 0.0
    %781 = vmatprep.subr.mxu0 0.0
    %782 = vmatpush1.msra.mxu0 0.0
    %783 = vmatprep.subr.mxu0 0.0
    %784 = vmatpush1.msra.mxu0 0.0
    %785 = vmatprep.subr.mxu0 0.0
    %786 = vmatpush1.msra.mxu0 0.0
    %787 = vmatprep.subr.mxu0 0.0
    %788 = vmatpush1.msra.mxu0 0.0
    %789 = vmatprep.subr.mxu0 0.0
    %790 = vmatpush1.msra.mxu0 0.0
    %791 = vmatprep.subr.mxu0 0.0
    %792 = vmatpush1.msra.mxu0 0.0
    %793 = vmatprep.subr.mxu0 0.0
    %794 = vmatpush1.msra.mxu0 0.0
    %795 = vmatprep.subr.mxu0 0.0
    %796 = vmatpush1.msra.mxu0 0.0
    %797 = vmatprep.subr.mxu0 0.0
    %798 = vmatpush1.msra.mxu0 0.0
    %799 = vmatprep.subr.mxu0 0.0
    %800 = vmatpush1.msra.mxu0 0.0
    %801 = vmatprep.subr.mxu0 0.0
    %802 = vmatpush1.msra.mxu0 0.0
    %803 = vmatprep.subr.mxu0 0.0
    %804 = vmatpush1.msra.mxu0 0.0
    %805 = vmatprep.subr.mxu0 0.0
    %806 = vmatpush1.msra.mxu0 0.0
    %807 = vmatprep.subr.mxu0 0.0
    %808 = vmatpush1.msra.mxu0 0.0
    %809 = vmatprep.subr.mxu0 0.0
    %810 = vmatpush1.msra.mxu0 0.0
    %811 = vmatprep.subr.mxu0 0.0
    %812 = vmatpush1.msra.mxu0 0.0
    %813 = vmatprep.subr.mxu0 0.0
    %814 = vmatpush1.msra.mxu0 0.0
    %815 = vmatprep.subr.mxu0 0.0
    %816 = vmatpush1.msra.mxu0 0.0
    %817 = vmatprep.subr.mxu0 0.0
    %818 = vmatpush1.msra.mxu0 0.0
    %819 = vmatprep.subr.mxu0 0.0
    %820 = vmatpush1.msra.mxu0 0.0
    %821 = vmatprep.subr.mxu0 0.0
    %822 = vmatpush1.msra.mxu0 0.0
    %823 = vmatprep.mubr.f32.mxu0 0.0
    %824 = vmatmul.mubr.f32.gmra.mrb[0].mxu0 %v754
    %v825 = vpop.f32.mrb[0].mxu0
    %v826 = vadd.f32 0.0, %v825
    %v827 = vpop.f32.mrb[0].mxu0
    %828 = vmatprep.mubr.f32.mxu0 0.0
    %829 = vmatmul.mubr.f32.gmra.mrb[0].mxu0 %v757
    %v830 = vpop.f32.mrb[0].mxu0
    %v831 = vadd.f32 0.0, %v830
    %v832 = vpop.f32.mrb[0].mxu0
    %833 = vdwg.mxu0
    %834 = vrot.lane.b32.xlu0 %v130, 64
    %v835 = vpop.permute.xlu0 %834
    %836 = vrot.lane.b32.xlu0 %v132, 64
    %v837 = vpop.permute.xlu0 %836
    %v841 = vsel %vm484, %v571, 0
    %v844 = vsel %vm484, %v572, 0
    %846 = vmatprep.subr.mxu0 0.0
    %847 = vmatpush1.msra.mxu0 %v835
    %848 = vmatprep.subr.mxu0 0.0
    %849 = vmatpush1.msra.mxu0 %v837
    %850 = vmatprep.subr.mxu0 0.0
    %851 = vmatpush1.msra.mxu0 0.0
    %852 = vmatprep.subr.mxu0 0.0
    %853 = vmatpush1.msra.mxu0 0.0
    %854 = vmatprep.subr.mxu0 0.0
    %855 = vmatpush1.msra.mxu0 0.0
    %856 = vmatprep.subr.mxu0 0.0
    %857 = vmatpush1.msra.mxu0 0.0
    %858 = vmatprep.subr.mxu0 0.0
    %859 = vmatpush1.msra.mxu0 0.0
    %860 = vmatprep.subr.mxu0 0.0
    %861 = vmatpush1.msra.mxu0 0.0
    %862 = vmatprep.subr.mxu0 0.0
    %863 = vmatpush1.msra.mxu0 0.0
    %864 = vmatprep.subr.mxu0 0.0
    %865 = vmatpush1.msra.mxu0 0.0
    %866 = vmatprep.subr.mxu0 0.0
    %867 = vmatpush1.msra.mxu0 0.0
    %868 = vmatprep.subr.mxu0 0.0
    %869 = vmatpush1.msra.mxu0 0.0
    %870 = vmatprep.subr.mxu0 0.0
    %871 = vmatpush1.msra.mxu0 0.0
    %872 = vmatprep.subr.mxu0 0.0
    %873 = vmatpush1.msra.mxu0 0.0
    %874 = vmatprep.subr.mxu0 0.0
    %875 = vmatpush1.msra.mxu0 0.0
    %876 = vmatprep.subr.mxu0 0.0
    %877 = vmatpush1.msra.mxu0 0.0
    %878 = vmatprep.subr.mxu0 0.0
    %879 = vmatpush1.msra.mxu0 0.0
    %880 = vmatprep.subr.mxu0 0.0
    %881 = vmatpush1.msra.mxu0 0.0
    %882 = vmatprep.subr.mxu0 0.0
    %883 = vmatpush1.msra.mxu0 0.0
    %884 = vmatprep.subr.mxu0 0.0
    %885 = vmatpush1.msra.mxu0 0.0
    %886 = vmatprep.subr.mxu0 0.0
    %887 = vmatpush1.msra.mxu0 0.0
    %888 = vmatprep.subr.mxu0 0.0
    %889 = vmatpush1.msra.mxu0 0.0
    %890 = vmatprep.subr.mxu0 0.0
    %891 = vmatpush1.msra.mxu0 0.0
    %892 = vmatprep.subr.mxu0 0.0
    %893 = vmatpush1.msra.mxu0 0.0
    %894 = vmatprep.subr.mxu0 0.0
    %895 = vmatpush1.msra.mxu0 0.0
    %896 = vmatprep.subr.mxu0 0.0
    %897 = vmatpush1.msra.mxu0 0.0
    %898 = vmatprep.subr.mxu0 0.0
    %899 = vmatpush1.msra.mxu0 0.0
    %900 = vmatprep.subr.mxu0 0.0
    %901 = vmatpush1.msra.mxu0 0.0
    %902 = vmatprep.subr.mxu0 0.0
    %903 = vmatpush1.msra.mxu0 0.0
    %904 = vmatprep.subr.mxu0 0.0
    %905 = vmatpush1.msra.mxu0 0.0
    %906 = vmatprep.subr.mxu0 0.0
    %907 = vmatpush1.msra.mxu0 0.0
    %908 = vmatprep.subr.mxu0 0.0
    %909 = vmatpush1.msra.mxu0 0.0
    %910 = vmatprep.mubr.f32.mxu0 0.0
    %911 = vmatmul.mubr.f32.gmra.mrb[0].mxu0 %v841
    %v912 = vpop.f32.mrb[0].mxu0
    %v913 = vadd.f32 0.0, %v912
    %v914 = vpop.f32.mrb[0].mxu0
    %915 = vmatprep.mubr.f32.mxu0 0.0
    %916 = vmatmul.mubr.f32.gmra.mrb[0].mxu0 %v844
    %v917 = vpop.f32.mrb[0].mxu0
    %v918 = vadd.f32 0.0, %v917
    %v919 = vpop.f32.mrb[0].mxu0
    %920 = vdwg.mxu0
    %v921 = vld [vmem:[%s3] sm:$0xff]
    %v922 = vld [vmem:[%s3 + $0x8] sm:$0xff]
    %v923 = vld [vmem:[%s3 + $0x10] sm:$0xff]
    %v924 = vld [vmem:[%s3 + $0x18] sm:$0xff]
    %v926 = vsel %vm139, %v652, 0
    %v929 = vsel %vm139, %v657, 0
    %931 = vmatprep.subr.mxu0 0.0
    %932 = vmatpush1.msra.mxu0 %v921
    %933 = vmatprep.subr.mxu0 0.0
    %934 = vmatpush1.msra.mxu0 0.0
    %935 = vmatprep.subr.mxu0 0.0
    %936 = vmatpush1.msra.mxu0 0.0
    %937 = vmatprep.subr.mxu0 0.0
    %938 = vmatpush1.msra.mxu0 0.0
    %939 = vmatprep.subr.mxu0 0.0
    %940 = vmatpush1.msra.mxu0 0.0
    %941 = vmatprep.subr.mxu0 0.0
    %942 = vmatpush1.msra.mxu0 0.0
    %943 = vmatprep.subr.mxu0 0.0
    %944 = vmatpush1.msra.mxu0 0.0
    %945 = vmatprep.subr.mxu0 0.0
    %946 = vmatpush1.msra.mxu0 0.0
    %947 = vmatprep.subr.mxu0 0.0
    %948 = vmatpush1.msra.mxu0 0.0
    %949 = vmatprep.subr.mxu0 0.0
    %950 = vmatpush1.msra.mxu0 0.0
    %951 = vmatprep.subr.mxu0 0.0
    %952 = vmatpush1.msra.mxu0 0.0
    %953 = vmatprep.subr.mxu0 0.0
    %954 = vmatpush1.msra.mxu0 0.0
    %955 = vmatprep.subr.mxu0 0.0
    %956 = vmatpush1.msra.mxu0 0.0
    %957 = vmatprep.subr.mxu0 0.0
    %958 = vmatpush1.msra.mxu0 0.0
    %959 = vmatprep.subr.mxu0 0.0
    %960 = vmatpush1.msra.mxu0 0.0
    %961 = vmatprep.subr.mxu0 0.0
    %962 = vmatpush1.msra.mxu0 0.0
    %963 = vmatprep.subr.mxu0 0.0
    %964 = vmatpush1.msra.mxu0 0.0
    %965 = vmatprep.subr.mxu0 0.0
    %966 = vmatpush1.msra.mxu0 0.0
    %967 = vmatprep.subr.mxu0 0.0
    %968 = vmatpush1.msra.mxu0 0.0
    %969 = vmatprep.subr.mxu0 0.0
    %970 = vmatpush1.msra.mxu0 0.0
    %971 = vmatprep.subr.mxu0 0.0
    %972 = vmatpush1.msra.mxu0 0.0
    %973 = vmatprep.subr.mxu0 0.0
    %974 = vmatpush1.msra.mxu0 0.0
    %975 = vmatprep.subr.mxu0 0.0
    %976 = vmatpush1.msra.mxu0 0.0
    %977 = vmatprep.subr.mxu0 0.0
    %978 = vmatpush1.msra.mxu0 0.0
    %979 = vmatprep.subr.mxu0 0.0
    %980 = vmatpush1.msra.mxu0 0.0
    %981 = vmatprep.subr.mxu0 0.0
    %982 = vmatpush1.msra.mxu0 0.0
    %983 = vmatprep.subr.mxu0 0.0
    %984 = vmatpush1.msra.mxu0 0.0
    %985 = vmatprep.subr.mxu0 0.0
    %986 = vmatpush1.msra.mxu0 0.0
    %987 = vmatprep.subr.mxu0 0.0
    %988 = vmatpush1.msra.mxu0 0.0
    %989 = vmatprep.subr.mxu0 0.0
    %990 = vmatpush1.msra.mxu0 0.0
    %991 = vmatprep.subr.mxu0 0.0
    %992 = vmatpush1.msra.mxu0 0.0
    %993 = vmatprep.subr.mxu0 0.0
    %994 = vmatpush1.msra.mxu0 0.0
    %995 = vmatprep.mubr.f32.mxu0 0.0
    %996 = vmatmul.mubr.f32.gmra.mrb[0].mxu0 %v926
    %v997 = vpop.f32.mrb[0].mxu0
    %v998 = vadd.f32 0.0, %v997
    %v999 = vpop.f32.mrb[0].mxu0
    %1000 = vmatprep.mubr.f32.mxu0 0.0
    %1001 = vmatmul.mubr.f32.gmra.mrb[0].mxu0 %v929
    %v1002 = vpop.f32.mrb[0].mxu0
    %v1003 = vadd.f32 0.0, %v1002
    %v1004 = vpop.f32.mrb[0].mxu0
    %1005 = vdwg.mxu0
    %v1007 = vsel %vm139, %v739, 0
    %v1010 = vsel %vm139, %v744, 0
    %1012 = vmatprep.subr.mxu0 0.0
    %1013 = vmatpush1.msra.mxu0 %v922
    %1014 = vmatprep.subr.mxu0 0.0
    %1015 = vmatpush1.msra.mxu0 0.0
    %1016 = vmatprep.subr.mxu0 0.0
    %1017 = vmatpush1.msra.mxu0 0.0
    %1018 = vmatprep.subr.mxu0 0.0
    %1019 = vmatpush1.msra.mxu0 0.0
    %1020 = vmatprep.subr.mxu0 0.0
    %1021 = vmatpush1.msra.mxu0 0.0
    %1022 = vmatprep.subr.mxu0 0.0
    %1023 = vmatpush1.msra.mxu0 0.0
    %1024 = vmatprep.subr.mxu0 0.0
    %1025 = vmatpush1.msra.mxu0 0.0
    %1026 = vmatprep.subr.mxu0 0.0
    %1027 = vmatpush1.msra.mxu0 0.0
    %1028 = vmatprep.subr.mxu0 0.0
    %1029 = vmatpush1.msra.mxu0 0.0
    %1030 = vmatprep.subr.mxu0 0.0
    %1031 = vmatpush1.msra.mxu0 0.0
    %1032 = vmatprep.subr.mxu0 0.0
    %1033 = vmatpush1.msra.mxu0 0.0
    %1034 = vmatprep.subr.mxu0 0.0
    %1035 = vmatpush1.msra.mxu0 0.0
    %1036 = vmatprep.subr.mxu0 0.0
    %1037 = vmatpush1.msra.mxu0 0.0
    %1038 = vmatprep.subr.mxu0 0.0
    %1039 = vmatpush1.msra.mxu0 0.0
    %1040 = vmatprep.subr.mxu0 0.0
    %1041 = vmatpush1.msra.mxu0 0.0
    %1042 = vmatprep.subr.mxu0 0.0
    %1043 = vmatpush1.msra.mxu0 0.0
    %1044 = vmatprep.subr.mxu0 0.0
    %1045 = vmatpush1.msra.mxu0 0.0
    %1046 = vmatprep.subr.mxu0 0.0
    %1047 = vmatpush1.msra.mxu0 0.0
    %1048 = vmatprep.subr.mxu0 0.0
    %1049 = vmatpush1.msra.mxu0 0.0
    %1050 = vmatprep.subr.mxu0 0.0
    %1051 = vmatpush1.msra.mxu0 0.0
    %1052 = vmatprep.subr.mxu0 0.0
    %1053 = vmatpush1.msra.mxu0 0.0
    %1054 = vmatprep.subr.mxu0 0.0
    %1055 = vmatpush1.msra.mxu0 0.0
    %1056 = vmatprep.subr.mxu0 0.0
    %1057 = vmatpush1.msra.mxu0 0.0
    %1058 = vmatprep.subr.mxu0 0.0
    %1059 = vmatpush1.msra.mxu0 0.0
    %1060 = vmatprep.subr.mxu0 0.0
    %1061 = vmatpush1.msra.mxu0 0.0
    %1062 = vmatprep.subr.mxu0 0.0
    %1063 = vmatpush1.msra.mxu0 0.0
    %1064 = vmatprep.subr.mxu0 0.0
    %1065 = vmatpush1.msra.mxu0 0.0
    %1066 = vmatprep.subr.mxu0 0.0
    %1067 = vmatpush1.msra.mxu0 0.0
    %1068 = vmatprep.subr.mxu0 0.0
    %1069 = vmatpush1.msra.mxu0 0.0
    %1070 = vmatprep.subr.mxu0 0.0
    %1071 = vmatpush1.msra.mxu0 0.0
    %1072 = vmatprep.subr.mxu0 0.0
    %1073 = vmatpush1.msra.mxu0 0.0
    %1074 = vmatprep.subr.mxu0 0.0
    %1075 = vmatpush1.msra.mxu0 0.0
    %1076 = vmatprep.mubr.f32.mxu0 0.0
    %1077 = vmatmul.mubr.f32.gmra.mrb[0].mxu0 %v1007
    %v1078 = vpop.f32.mrb[0].mxu0
    %v1079 = vadd.f32 0.0, %v1078
    %v1080 = vpop.f32.mrb[0].mxu0
    %1081 = vmatprep.mubr.f32.mxu0 0.0
    %1082 = vmatmul.mubr.f32.gmra.mrb[0].mxu0 %v1010
    %v1083 = vpop.f32.mrb[0].mxu0
    %v1084 = vadd.f32 0.0, %v1083
    %v1085 = vpop.f32.mrb[0].mxu0
    %1086 = vdwg.mxu0
    %v1088 = vsel %vm139, %v826, 0
    %v1091 = vsel %vm139, %v831, 0
    %1093 = vmatprep.subr.mxu0 0.0
    %1094 = vmatpush1.msra.mxu0 %v923
    %1095 = vmatprep.subr.mxu0 0.0
    %1096 = vmatpush1.msra.mxu0 0.0
    %1097 = vmatprep.subr.mxu0 0.0
    %1098 = vmatpush1.msra.mxu0 0.0
    %1099 = vmatprep.subr.mxu0 0.0
    %1100 = vmatpush1.msra.mxu0 0.0
    %1101 = vmatprep.subr.mxu0 0.0
    %1102 = vmatpush1.msra.mxu0 0.0
    %1103 = vmatprep.subr.mxu0 0.0
    %1104 = vmatpush1.msra.mxu0 0.0
    %1105 = vmatprep.subr.mxu0 0.0
    %1106 = vmatpush1.msra.mxu0 0.0
    %1107 = vmatprep.subr.mxu0 0.0
    %1108 = vmatpush1.msra.mxu0 0.0
    %1109 = vmatprep.subr.mxu0 0.0
    %1110 = vmatpush1.msra.mxu0 0.0
    %1111 = vmatprep.subr.mxu0 0.0
    %1112 = vmatpush1.msra.mxu0 0.0
    %1113 = vmatprep.subr.mxu0 0.0
    %1114 = vmatpush1.msra.mxu0 0.0
    %1115 = vmatprep.subr.mxu0 0.0
    %1116 = vmatpush1.msra.mxu0 0.0
    %1117 = vmatprep.subr.mxu0 0.0
    %1118 = vmatpush1.msra.mxu0 0.0
    %1119 = vmatprep.subr.mxu0 0.0
    %1120 = vmatpush1.msra.mxu0 0.0
    %1121 = vmatprep.subr.mxu0 0.0
    %1122 = vmatpush1.msra.mxu0 0.0
    %1123 = vmatprep.subr.mxu0 0.0
    %1124 = vmatpush1.msra.mxu0 0.0
    %1125 = vmatprep.subr.mxu0 0.0
    %1126 = vmatpush1.msra.mxu0 0.0
    %1127 = vmatprep.subr.mxu0 0.0
    %1128 = vmatpush1.msra.mxu0 0.0
    %1129 = vmatprep.subr.mxu0 0.0
    %1130 = vmatpush1.msra.mxu0 0.0
    %1131 = vmatprep.subr.mxu0 0.0
    %1132 = vmatpush1.msra.mxu0 0.0
    %1133 = vmatprep.subr.mxu0 0.0
    %1134 = vmatpush1.msra.mxu0 0.0
    %1135 = vmatprep.subr.mxu0 0.0
    %1136 = vmatpush1.msra.mxu0 0.0
    %1137 = vmatprep.subr.mxu0 0.0
    %1138 = vmatpush1.msra.mxu0 0.0
    %1139 = vmatprep.subr.mxu0 0.0
    %1140 = vmatpush1.msra.mxu0 0.0
    %1141 = vmatprep.subr.mxu0 0.0
    %1142 = vmatpush1.msra.mxu0 0.0
    %1143 = vmatprep.subr.mxu0 0.0
    %1144 = vmatpush1.msra.mxu0 0.0
    %1145 = vmatprep.subr.mxu0 0.0
    %1146 = vmatpush1.msra.mxu0 0.0
    %1147 = vmatprep.subr.mxu0 0.0
    %1148 = vmatpush1.msra.mxu0 0.0
    %1149 = vmatprep.subr.mxu0 0.0
    %1150 = vmatpush1.msra.mxu0 0.0
    %1151 = vmatprep.subr.mxu0 0.0
    %1152 = vmatpush1.msra.mxu0 0.0
    %1153 = vmatprep.subr.mxu0 0.0
    %1154 = vmatpush1.msra.mxu0 0.0
    %1155 = vmatprep.subr.mxu0 0.0
    %1156 = vmatpush1.msra.mxu0 0.0
    %1157 = vmatprep.mubr.f32.mxu0 0.0
    %1158 = vmatmul.mubr.f32.gmra.mrb[0].mxu0 %v1088
    %v1159 = vpop.f32.mrb[0].mxu0
    %v1160 = vadd.f32 0.0, %v1159
    %v1161 = vpop.f32.mrb[0].mxu0
    %1162 = vmatprep.mubr.f32.mxu0 0.0
    %1163 = vmatmul.mubr.f32.gmra.mrb[0].mxu0 %v1091
    %v1164 = vpop.f32.mrb[0].mxu0
    %v1165 = vadd.f32 0.0, %v1164
    %v1166 = vpop.f32.mrb[0].mxu0
    %1167 = vdwg.mxu0
    %v1169 = vsel %vm139, %v913, 0
    %v1172 = vsel %vm139, %v918, 0
    %1174 = vmatprep.subr.mxu0 0.0
    %1175 = vmatpush1.msra.mxu0 %v924
    %1176 = vmatprep.subr.mxu0 0.0
    %1177 = vmatpush1.msra.mxu0 0.0
    %1178 = vmatprep.subr.mxu0 0.0
    %1179 = vmatpush1.msra.mxu0 0.0
    %1180 = vmatprep.subr.mxu0 0.0
    %1181 = vmatpush1.msra.mxu0 0.0
    %1182 = vmatprep.subr.mxu0 0.0
    %1183 = vmatpush1.msra.mxu0 0.0
    %1184 = vmatprep.subr.mxu0 0.0
    %1185 = vmatpush1.msra.mxu0 0.0
    %1186 = vmatprep.subr.mxu0 0.0
    %1187 = vmatpush1.msra.mxu0 0.0
    %1188 = vmatprep.subr.mxu0 0.0
    %1189 = vmatpush1.msra.mxu0 0.0
    %1190 = vmatprep.subr.mxu0 0.0
    %1191 = vmatpush1.msra.mxu0 0.0
    %1192 = vmatprep.subr.mxu0 0.0
    %1193 = vmatpush1.msra.mxu0 0.0
    %1194 = vmatprep.subr.mxu0 0.0
    %1195 = vmatpush1.msra.mxu0 0.0
    %1196 = vmatprep.subr.mxu0 0.0
    %1197 = vmatpush1.msra.mxu0 0.0
    %1198 = vmatprep.subr.mxu0 0.0
    %1199 = vmatpush1.msra.mxu0 0.0
    %1200 = vmatprep.subr.mxu0 0.0
    %1201 = vmatpush1.msra.mxu0 0.0
    %1202 = vmatprep.subr.mxu0 0.0
    %1203 = vmatpush1.msra.mxu0 0.0
    %1204 = vmatprep.subr.mxu0 0.0
    %1205 = vmatpush1.msra.mxu0 0.0
    %1206 = vmatprep.subr.mxu0 0.0
    %1207 = vmatpush1.msra.mxu0 0.0
    %1208 = vmatprep.subr.mxu0 0.0
    %1209 = vmatpush1.msra.mxu0 0.0
    %1210 = vmatprep.subr.mxu0 0.0
    %1211 = vmatpush1.msra.mxu0 0.0
    %1212 = vmatprep.subr.mxu0 0.0
    %1213 = vmatpush1.msra.mxu0 0.0
    %1214 = vmatprep.subr.mxu0 0.0
    %1215 = vmatpush1.msra.mxu0 0.0
    %1216 = vmatprep.subr.mxu0 0.0
    %1217 = vmatpush1.msra.mxu0 0.0
    %1218 = vmatprep.subr.mxu0 0.0
    %1219 = vmatpush1.msra.mxu0 0.0
    %1220 = vmatprep.subr.mxu0 0.0
    %1221 = vmatpush1.msra.mxu0 0.0
    %1222 = vmatprep.subr.mxu0 0.0
    %1223 = vmatpush1.msra.mxu0 0.0
    %1224 = vmatprep.subr.mxu0 0.0
    %1225 = vmatpush1.msra.mxu0 0.0
    %1226 = vmatprep.subr.mxu0 0.0
    %1227 = vmatpush1.msra.mxu0 0.0
    %1228 = vmatprep.subr.mxu0 0.0
    %1229 = vmatpush1.msra.mxu0 0.0
    %1230 = vmatprep.subr.mxu0 0.0
    %1231 = vmatpush1.msra.mxu0 0.0
    %1232 = vmatprep.subr.mxu0 0.0
    %1233 = vmatpush1.msra.mxu0 0.0
    %1234 = vmatprep.subr.mxu0 0.0
    %1235 = vmatpush1.msra.mxu0 0.0
    %1236 = vmatprep.subr.mxu0 0.0
    %1237 = vmatpush1.msra.mxu0 0.0
    %1238 = vmatprep.mubr.f32.mxu0 0.0
    %1239 = vmatmul.mubr.f32.gmra.mrb[0].mxu0 %v1169
    %v1240 = vpop.f32.mrb[0].mxu0
    %v1241 = vadd.f32 0.0, %v1240
    %v1242 = vpop.f32.mrb[0].mxu0
    %1243 = vmatprep.mubr.f32.mxu0 0.0
    %1244 = vmatmul.mubr.f32.gmra.mrb[0].mxu0 %v1172
    %v1245 = vpop.f32.mrb[0].mxu0
    %v1246 = vadd.f32 0.0, %v1245
    %v1247 = vpop.f32.mrb[0].mxu0
    %1248 = vdwg.mxu0
    %v1249 = vsel %vm37, %v998, 0.0
    %v1250 = vsel %vm37, %v1079, 0.0
    %v1251 = vadd.f32 %v1249, %v1250
    %v1252 = vsel %vm37, %v1160, 0.0
    %v1253 = vadd.f32 %v1251, %v1252
    %v1254 = vsel %vm37, %v1241, 0.0
    %v1255 = vadd.f32 %v1253, %v1254
    %v1256 = vsel %vm37, %v1003, 0.0
    %v1257 = vsel %vm37, %v1084, 0.0
    %v1258 = vadd.f32 %v1256, %v1257
    %v1259 = vsel %vm37, %v1165, 0.0
    %v1260 = vadd.f32 %v1258, %v1259
    %v1261 = vsel %vm37, %v1246, 0.0
    %v1262 = vadd.f32 %v1260, %v1261
    %v1263 = vld [vmem:[%s4] sm:$0x1]
    %v1265 = vlaneseq
    %v1266 = vshrl.u32 %v1265, 7
    %v1267 = vsub.s32 0, %v1266
    %v1268 = vrot.slane %v1263, %v1267
    %v1270 = vadd.f32 %v1255, %v1268
    %v1271 = vadd.f32 %v1262, %v1268
    %1272 = vst.msk [vmem:[#allocation2] sm:$0xff] %vm37, %v1270
    %1273 = vst.msk [vmem:[#allocation2 + $0x8] sm:$0xff] %vm37, %v1271
    // Predicated region
    $region26: #{multi_head_attention.1} parent=1 // pred_check
      _
    $region27: #{multi_head_attention.1} parent=1 // pred_check_branch
      %1275 = sbr.rel (0) target = $region29
    $region28: #{multi_head_attention.1} parent=1 // pred_region
      %s1277 = ssub.s32 256, 256
      %1278 = vsyncadd [#allocation3], %s1277
      %s1279 = sshll.u32 [#allocation2], 4
      %s1280 = int_to_ptr.vmem [resolvable:$true] %s1279
      %1285 = dma.vmem_to_hbm [thread:$0]  %s1280, 256, %s6, [#allocation3], 128, 128, 8
    $region29: #{multi_head_attention.1} parent=1 // pred_fallthru
      _
    // Predicated region
    $region30: #{multi_head_attention.1} parent=1 // pred_check
      _
    $region31: #{multi_head_attention.1} parent=1 // pred_check_branch
      %1287 = sbr.rel (0) target = $region33
    $region32: #{multi_head_attention.1} parent=1 // pred_region
      %1288 = dma.done [#allocation3], 256
    $region33: #{multi_head_attention.1} parent=1 // pred_fallthru
      _
    %1289 = vsyncpa [#allocation3], 1

</llo_original>
